<compile_context>
chip_gen: v5e
topology: v5e:2x2
jax: 0.10.0
libtpu: 0.0.40
codegen_flags: <defaults>
</compile_context>

<pallas_src>
import functools

import jax
import jax.numpy as jnp
from jax.experimental import pallas as pl
from jax.experimental.pallas import tpu as pltpu

_MIB = 1024 * 1024


# ---------------------------------------------------------------------------
# VMEM budgeting / tile selection helpers
# ---------------------------------------------------------------------------
def _vmem_limit_bytes(need):
    """Scoped-VMEM request: ~2x the computed need, well under physical VMEM."""
    try:
        cap = int(getattr(pltpu.get_tpu_info(), "vmem_capacity_bytes", 64 * _MIB))
    except Exception:  # pragma: no cover - info query unavailable
        cap = 64 * _MIB                      # v7x has the smallest VMEM
    soft = min(int(cap * 0.45), 48 * _MIB)   # stay <= ~45% of physical
    want = max(16 * _MIB, 2 * int(need))
    return max(min(want, soft), int(need) + 4 * _MIB)


def _choose_tq(q, cap=512):
    """q-tile: large & 128-aligned for MXU fill, but >=2 blocks for v7x 2 TCs."""
    divs = [d for d in range(8, min(q, cap) + 1, 8) if q % d == 0]
    if not divs:
        return q                              # small / odd Q: single full block
    big_split = [d for d in divs if d >= 128 and q // d >= 2]
    if big_split:
        return max(big_split)
    any_split = [d for d in divs if d >= 16 and q // d >= 2]
    if any_split:
        return max(any_split)
    return max(divs)


def _choose_tp(p, cap=1024):
    """p-tile: prefer 256-multiples (v6e/v7x MXU width), else 128-multiples."""
    for align in (256, 128):
        divs = [d for d in range(align, min(p, cap) + 1, align) if p % d == 0]
        if divs:
            return max(divs)
    return p


def _choose_norm_rows(n, d):
    """Rows per block for kernel A so the double-buffered working set fits."""
    budget = 12 * _MIB            # in f32(4) + out f32(4) + out bf16(2), x2 buffers
    cap = min(2048, max(128, budget // (2 * 10 * d)))
    divs = [r for r in range(128, min(n, cap) + 1, 128) if n % r == 0]
    return max(divs) if divs else n


# ---------------------------------------------------------------------------
# Kernel A: passage L2 normalization (torch.nn.functional.normalize, eps=1e-12)
#           + bf16 K-major (D, P) copy for the MXU.
# ---------------------------------------------------------------------------
def _p_norm_kernel(x_ref, xn_ref, xt_ref):
    x = x_ref[...].astype(jnp.float32)
    sumsq = jnp.sum(x * x, axis=-1, keepdims=True)
    inv = jax.lax.rsqrt(jnp.maximum(sumsq, 1e-24))   # 1/max(||x||, 1e-12)
    xn = x * inv
    xn_ref[...] = xn                                  # f32 reps for the caller
    xt_ref[...] = xn.T.astype(jnp.bfloat16)           # (D, rows) bf16, K-major


def p_normalize(p_raw, *, block_rows=None):
    n, d = p_raw.shape
    if block_rows is None:
        block_rows = _choose_norm_rows(n, d)
    assert n % block_rows == 0
    need = 2 * block_rows * d * (4 + 4 + 2)           # double-buffered blocks
    return pl.pallas_call(
        _p_norm_kernel,
        grid=(n // block_rows,),
        in_specs=[pl.BlockSpec((block_rows, d), lambda i: (i, 0))],
        out_specs=(pl.BlockSpec((block_rows, d), lambda i: (i, 0)),
                   pl.BlockSpec((d, block_rows), lambda i: (0, i))),
        out_shape=(jax.ShapeDtypeStruct((n, d), jnp.float32),
                   jax.ShapeDtypeStruct((d, n), jnp.bfloat16)),
        compiler_params=pltpu.CompilerParams(
            dimension_semantics=("parallel",),
            vmem_limit_bytes=_vmem_limit_bytes(need)),
    )(p_raw)


# ---------------------------------------------------------------------------
# Kernel B: fused query-normalize + tiled similarity + online-softmax CE loss
# ---------------------------------------------------------------------------
def _scores_loss_kernel(q_ref, pt_ref, scores_ref, rowloss_ref, qreps_ref,
                        qbf_sc, m_sc, l_sc, picked_sc,
                        *, inv_temperature, group_size):
    tq, tp = scores_ref.shape
    i = pl.program_id(0)            # q-block index (parallel)
    j = pl.program_id(1)            # p-block index (arbitrary / reduction)
    nj = pl.num_programs(1)

    @pl.when(j == 0)
    def _():
        # Fused q normalization (q tile is resident across the whole P axis).
        q = q_ref[...].astype(jnp.float32)
        inv = jax.lax.rsqrt(jnp.maximum(jnp.sum(q * q, axis=-1, keepdims=True),
                                        1e-24))
        qn = q * inv
        qreps_ref[...] = qn                                   # f32 reps out
        # Fold 1/temperature into the bf16 MXU operand (done once per q tile).
        qbf_sc[...] = (qn * inv_temperature).astype(jnp.bfloat16)
        m_sc[...] = jnp.full_like(m_sc, -jnp.inf)
        l_sc[...] = jnp.zeros_like(l_sc)
        picked_sc[...] = jnp.zeros_like(picked_sc)

    # (tq, D) bf16 x (D, tp) bf16 -> f32 on the MXU (RHS already K-major).
    s = jax.lax.dot_general(
        qbf_sc[...], pt_ref[...],
        dimension_numbers=(((1,), (0,)), ((), ())),
        preferred_element_type=jnp.float32)                   # (tq, tp)
    scores_ref[...] = s.astype(scores_ref.dtype)

    # Online logsumexp over the P axis (running max rescaling).
    m_prev = m_sc[...]
    m_new = jnp.maximum(m_prev, jnp.max(s, axis=-1, keepdims=True))
    l_sc[...] = l_sc[...] * jnp.exp(m_prev - m_new) + \
        jnp.sum(jnp.exp(s - m_new), axis=-1, keepdims=True)
    m_sc[...] = m_new

    # Pick the target logit only in the P block that can contain it.
    row0 = i * tq
    t_lo = row0 * group_size                      # first row's target column
    t_hi = (row0 + tq - 1) * group_size           # last row's target column
    blk_lo = j * tp

    @pl.when(jnp.logical_and(t_hi >= blk_lo, t_lo < blk_lo + tp))
    def _():
        row_idx = jax.lax.broadcasted_iota(jnp.int32, (tq, tp), 0)
        col_idx = jax.lax.broadcasted_iota(jnp.int32, (tq, tp), 1)
        tgt = (row0 + row_idx) * group_size - blk_lo   # local target column
        hit = col_idx == tgt
        picked_sc[...] += jnp.sum(jnp.where(hit, s, 0.0),
                                  axis=-1, keepdims=True)

    @pl.when(j == nj - 1)
    def _():
        rowloss_ref[...] = m_sc[...] + jnp.log(l_sc[...]) - picked_sc[...]


def contrastive_scores_and_loss(q_raw, pt_bf16, *, temperature, group_size,
                                tq, tp, p_buffers=2, scores_dtype=jnp.float32):
    Q, D = q_raw.shape
    Dp, P = pt_bf16.shape
    assert D == Dp and Q % tq == 0 and P % tp == 0

    # Shrink tiles / buffer depth until the working set fits the budget
    # (kept <= ~45% of v7x's 64 MiB physical VMEM after the ~2x request).
    budget = 20 * _MIB
    while True:
        need = (2 * tq * D * 4                 # q_raw in (double-buffered)
                + p_buffers * tp * D * 2       # p^T bf16 in
                + 2 * tq * tp * 4              # scores out
                + 2 * tq * D * 4               # q_reps out
                + 2 * tq * 128 * 4             # rowloss out (lane-padded)
                + tq * D * 2 + 3 * tq * 128 * 4)   # scratch
        if need <= budget:
            break
        if p_buffers > 2:
            p_buffers = 2
        elif tp % 256 == 0 and tp > 128 and P % (tp // 2) == 0:
            tp //= 2
        elif tq % 16 == 0 and tq > 8 and Q % (tq // 2) == 0:
            tq //= 2
        else:
            break

    kernel = functools.partial(
        _scores_loss_kernel,
        inv_temperature=1.0 / float(temperature),
        group_size=int(group_size))

    p_spec_kw = {}
    if p_buffers > 2:
        p_spec_kw["pipeline_mode"] = pl.Buffered(p_buffers)

    scores, rowloss, q_reps = pl.pallas_call(
        kernel,
        grid=(Q // tq, P // tp),
        in_specs=[pl.BlockSpec((tq, D), lambda i, j: (i, 0)),
                  pl.BlockSpec((D, tp), lambda i, j: (0, j), **p_spec_kw)],
        out_specs=(pl.BlockSpec((tq, tp), lambda i, j: (i, j)),
                   pl.BlockSpec((tq, 1), lambda i, j: (i, 0)),
                   pl.BlockSpec((tq, D), lambda i, j: (i, 0))),
        out_shape=(jax.ShapeDtypeStruct((Q, P), scores_dtype),
                   jax.ShapeDtypeStruct((Q, 1), jnp.float32),
                   jax.ShapeDtypeStruct((Q, D), jnp.float32)),
        scratch_shapes=[pltpu.VMEM((tq, D), jnp.bfloat16),   # q bf16 (scaled)
                        pltpu.VMEM((tq, 1), jnp.float32),    # running max
                        pltpu.VMEM((tq, 1), jnp.float32),    # running sum
                        pltpu.VMEM((tq, 1), jnp.float32)],   # picked target
        compiler_params=pltpu.CompilerParams(
            dimension_semantics=("parallel", "arbitrary"),
            vmem_limit_bytes=_vmem_limit_bytes(need)),
    )(q_raw, pt_bf16)

    loss = jnp.mean(rowloss)    # tiny final reduction outside the kernel
    return q_reps, scores, loss


def model_forward(q_raw, p_raw, *, temperature, tq=None, tp=None):
    """Training forward pass. Returns (q_reps, p_reps, scores, loss)."""
    Q, D = q_raw.shape
    P, _ = p_raw.shape
    group_size = P // Q
    if tq is None:
        tq = _choose_tq(Q)
    if tp is None:
        tp = _choose_tp(P)

    p_reps, pt_bf16 = p_normalize(p_raw)

    def run(buffers):
        return contrastive_scores_and_loss(
            q_raw, pt_bf16, temperature=temperature, group_size=group_size,
            tq=tq, tp=tp, p_buffers=buffers)

    # Deeper p prefetch at small D (kernel is HBM/step-overhead bound there).
    want_buffers = 3 if D <= 256 else 2
    if want_buffers > 2:
        try:
            out = run(want_buffers)
            jax.block_until_ready(out)
        except Exception:           # fall back if deeper pipelining unsupported
            out = run(2)
    else:
        out = run(2)

    q_reps, scores, loss = out
    return q_reps, p_reps, scores, loss


# ---------------------------------------------------------------------------
# Deterministic stand-in encoder (plain JAX glue) + CLS pooling
# ---------------------------------------------------------------------------
def tiny_encode(params, input_ids):
    hidden = jnp.take(params["embed"], input_ids, axis=0)      # (B, S, Dm)
    return jnp.tanh(
        jnp.einsum("bsd,de->bse", hidden, params["proj_w"]) + params["proj_b"])


def embed_cls(params, inputs):
    """ModelForTraining.embed(): CLS (first-token) pooling (non-Llama branch)."""
    last_hidden_state = tiny_encode(params, inputs["input_ids"])
    return last_hidden_state[:, 0, :]                           # (B, D)


# ---------------------------------------------------------------------------
# Pure-JAX references
# ---------------------------------------------------------------------------
def _normalize_ref(x):
    return x / jnp.maximum(jnp.linalg.norm(x, axis=-1, keepdims=True), 1e-12)


def reference_f32(q, p, temperature, group_size):
    qn, pn = _normalize_ref(q), _normalize_ref(p)
    scores = (qn @ pn.T) / temperature
    Q = q.shape[0]
    target = jnp.arange(Q) * group_size
    loss = -jnp.mean(jax.nn.log_softmax(scores, -1)[jnp.arange(Q), target])
    return qn, pn, scores, loss


def reference_bf16_feed(q, p, temperature, group_size):
    """Mirrors the kernel numerics: 1/T folded into q, bf16 MXU operands."""
    qn, pn = _normalize_ref(q), _normalize_ref(p)
    qb = (qn * (1.0 / temperature)).astype(jnp.bfloat16).astype(jnp.float32)
    pb = pn.astype(jnp.bfloat16).astype(jnp.float32)
    scores = qb @ pb.T
    Q = q.shape[0]
    target = jnp.arange(Q) * group_size
    loss = -jnp.mean(jax.nn.log_softmax(scores, -1)[jnp.arange(Q), target])
    return scores, loss


if __name__ == "__main__":
    key = jax.random.PRNGKey(0)
    k_emb, k_w, k_b, k_qid, k_pid = jax.random.split(key, 5)

    # Small but (8,128)-aligned shapes: 32 queries, group_size=8 passages each,
    # hidden dim 128 (lane-dense).  Auto-tiling picks tq=16 (2 q blocks), tp=256.
    VOCAB, SEQ, D_MODEL, D = 128, 8, 32, 128
    Q_BATCH, GROUP = 32, 8
    P_BATCH = Q_BATCH * GROUP
    TEMPERATURE = 0.05

    params = {
        "embed": jax.random.normal(k_emb, (VOCAB, D_MODEL), jnp.float32) * 0.1,
        "proj_w": jax.random.normal(k_w, (D_MODEL, D), jnp.float32) * 0.1,
        "proj_b": jax.random.normal(k_b, (D,), jnp.float32) * 0.01,
    }
    query = {
        "input_ids": jax.random.randint(k_qid, (Q_BATCH, SEQ), 0, VOCAB),
        "attention_mask": jnp.ones((Q_BATCH, SEQ), jnp.int32),
    }
    passage = {
        "input_ids": jax.random.randint(k_pid, (P_BATCH, SEQ), 0, VOCAB),
        "attention_mask": jnp.ones((P_BATCH, SEQ), jnp.int32),
    }

    # forward(): embed -> normalize -> similarity -> cross-entropy
    q_raw = embed_cls(params, query)      # (Q, D)
    p_raw = embed_cls(params, passage)    # (P, D)

    q_reps, p_reps, scores, loss = model_forward(
        q_raw, p_raw, temperature=TEMPERATURE)
    jax.block_until_ready((q_reps, p_reps, scores, loss))

    # --- checks ------------------------------------------------------------
    qn_r, pn_r, scores_f32, loss_f32 = reference_f32(
        q_raw, p_raw, TEMPERATURE, GROUP)
    scores_bf, loss_bf = reference_bf16_feed(q_raw, p_raw, TEMPERATURE, GROUP)

    assert jnp.allclose(q_reps, qn_r, atol=2e-5), "q_reps mismatch"
    assert jnp.allclose(p_reps, pn_r, atol=2e-5), "p_reps mismatch"
    # tight check vs reference that mirrors the kernel's bf16 MXU feed
    assert jnp.allclose(scores, scores_bf, atol=1e-2), "scores mismatch (bf16 ref)"
    assert jnp.allclose(loss, loss_bf, atol=2e-3), "loss mismatch (bf16 ref)"
    # loose check vs pure-f32 module semantics
    assert jnp.allclose(scores, scores_f32, atol=0.2), "scores drift vs f32 ref"
    assert jnp.allclose(loss, loss_f32, atol=0.25), "loss drift vs f32 ref"

    print("KERNEL_OK")
</pallas_src>

<mosaic_0001>
module attributes {stable_mosaic.version = 11 : i64} {
  func.func @_p_norm_kernel(%arg0: i32, %arg1: memref<256x128xf32, #tpu.memory_space<vmem>>, %arg2: memref<256x128xf32, #tpu.memory_space<vmem>>, %arg3: memref<128x256xbf16, #tpu.memory_space<vmem>>) attributes {dimension_semantics = [#tpu.dimension_semantics<parallel>], iteration_bounds = array<i64: 1>, scalar_prefetch = 0 : i64, scratch_operands = 0 : i64, tpu.core_type = #tpu.core_type<tc>, window_params = [{transform_indices = @transform_0, window_bounds = array<i64: 256, 128>}, {transform_indices = @transform_1, window_bounds = array<i64: 256, 128>}, {transform_indices = @transform_2, window_bounds = array<i64: 128, 256>}]} {
    %c0 = arith.constant 0 : index
    %c0_0 = arith.constant 0 : index
    %0 = vector.load %arg1[%c0, %c0_0] : memref<256x128xf32, #tpu.memory_space<vmem>>, vector<256x128xf32>
    %1 = arith.mulf %0, %0 : vector<256x128xf32>
    %cst = arith.constant dense<0.000000e+00> : vector<256xf32>
    %2 = vector.multi_reduction <add>, %1, %cst [1] : vector<256x128xf32> to vector<256xf32>
    %3 = vector.shape_cast %2 : vector<256xf32> to vector<256x1xf32>
    %cst_1 = arith.constant 1.000000e-24 : f32
    %4 = vector.broadcast %cst_1 : f32 to vector<256x1xf32>
    %5 = arith.maximumf %3, %4 : vector<256x1xf32>
    %6 = math.rsqrt %5 : vector<256x1xf32>
    %7 = vector.broadcast %6 : vector<256x1xf32> to vector<256x128xf32>
    %8 = arith.mulf %0, %7 : vector<256x128xf32>
    %c0_2 = arith.constant 0 : index
    %c0_3 = arith.constant 0 : index
    %9 = vector.load %arg2[%c0_2, %c0_3] : memref<256x128xf32, #tpu.memory_space<vmem>>, vector<256x128xf32>
    tpu.vector_store %arg2[%c0_2, %c0_3], %8 {strides = array<i32>} : memref<256x128xf32, #tpu.memory_space<vmem>>, vector<256x128xf32>,
    %10 = tpu.transpose %8, [1, 0] : vector<256x128xf32> -> vector<128x256xf32>
    %11 = arith.truncf %10 : vector<128x256xf32> to vector<128x256xbf16>
    %c0_4 = arith.constant 0 : index
    %c0_5 = arith.constant 0 : index
    %12 = vector.load %arg3[%c0_4, %c0_5] : memref<128x256xbf16, #tpu.memory_space<vmem>>, vector<128x256xbf16>
    tpu.vector_store %arg3[%c0_4, %c0_5], %11 {strides = array<i32>} : memref<128x256xbf16, #tpu.memory_space<vmem>>, vector<128x256xbf16>,
    return
  }
  func.func @transform_0(%arg0: i32) -> (i32, i32) {
    %c0_i32 = arith.constant 0 : i32
    %c0_i32_0 = arith.constant 0 : i32
    return %arg0, %c0_i32 : i32, i32
  }
  func.func @transform_1(%arg0: i32) -> (i32, i32) {
    %c0_i32 = arith.constant 0 : i32
    %c0_i32_0 = arith.constant 0 : i32
    return %arg0, %c0_i32 : i32, i32
  }
  func.func @transform_2(%arg0: i32) -> (i32, i32) {
    %c0_i32 = arith.constant 0 : i32
    %c0_i32_0 = arith.constant 0 : i32
    return %c0_i32, %arg0 : i32, i32
  }
}

</mosaic_0001>

<llo_original>
// kernel: tpu_custom_call.1
$region0: #{tpu_custom_call.1}
  #allocation0 [shape = 'u32[]', space=smem, size = 0x4, offset = 0x4, fixed_abs, tag = 'smem constant byte address 0x4 - core index']
  #allocation1 [shape = 'u32[72,128]{1,0:T(1,128)}', space=vmem, size = 0x9000, scoped, tag = 'internal scratch']
  %s0 = inlined_call_operand.hbm [shape: f32[256,128], index: 0, kind: input, shape index: {}]
  %s1 = inlined_call_operand.hbm [shape: f32[256,128], index: 1, kind: output, shape index: {0}]
  %s2 = inlined_call_operand.hbm [shape: bf16[128,256], index: 2, kind: output, shape index: {1}]
  %3 = xla_tuple %s1, %s2
  %s4 = sld [smem:[#allocation0]]
  $region26: #{tpu_custom_call.1} parent=0
    _
  %s6 = ssub.s32 1, %s4
  %s7 = scalar_select 0, %s6, %s4
  $region1: #{tpu_custom_call.1} parent=0
    #allocation2 [shape = 'u8[131072]{0}', space=vmem, size = 0x20000, scoped, tag = 'input window, operand 0, single buffered']
    #allocation3 [shape = 's32[1]{0}', space=sflag, size = 0x4, scoped, tag = 'scoped memory for tpu_custom_call.1']
    #allocation4 [shape = 's32[1]{0}', space=sflag, size = 0x4, scoped, tag = 'scoped memory for tpu_custom_call.1']
    #allocation5 [shape = 'u8[131072]{0}', space=vmem, size = 0x20000, scoped, tag = 'output window, operand 0, single buffered']
    #allocation6 [shape = 'u8[65536]{0}', space=vmem, size = 0x10000, scoped, tag = 'output window, operand 1, single buffered']
    #allocation7 [shape = 's32[1]{0}', space=sflag, size = 0x4, scoped, tag = 'scoped memory for tpu_custom_call.1']
    %8 = vsyncpa [#allocation3], 0
    %9 = vsyncpa [#allocation4], 0
    %10 = vsyncpa [#allocation7], 0
    // Predicated region
    $region2: #{tpu_custom_call.1} parent=1 // pred_check
      _
    $region3: #{tpu_custom_call.1} parent=1 // pred_check_branch
      %12 = sbr.rel (0) target = $region5
    $region4: #{tpu_custom_call.1} parent=1 // pred_region
      %14 = vsyncadd [#allocation3], 0
      %s15 = sshll.u32 %s0, 4
      %s16 = int_to_ptr.hbm [resolvable:$true] %s15
      %s17 = sshll.u32 [#allocation2], 4
      %s18 = int_to_ptr.vmem [resolvable:$true] %s17
      %23 = dma.hbm_to_vmem [thread:$0]  %s16, 4096, %s18, [#allocation3], 128, 128, 8
    $region5: #{tpu_custom_call.1} parent=1 // pred_fallthru
      _
    // Predicated region
    $region6: #{tpu_custom_call.1} parent=1 // pred_check
      _
    $region7: #{tpu_custom_call.1} parent=1 // pred_check_branch
      %25 = sbr.rel (0) target = $region9
    $region8: #{tpu_custom_call.1} parent=1 // pred_region
      %27 = dma.done [#allocation3], 4096
    $region9: #{tpu_custom_call.1} parent=1 // pred_fallthru
      _
    %v28 = vld [vmem:[#allocation2] sm:$0xff]
    %v29 = vld [vmem:[#allocation2 + $0x8] sm:$0xff]
    %v30 = vld [vmem:[#allocation2 + $0x10] sm:$0xff]
    %v31 = vld [vmem:[#allocation2 + $0x18] sm:$0xff]
    %v32 = vld [vmem:[#allocation2 + $0x20] sm:$0xff]
    %v33 = vld [vmem:[#allocation2 + $0x28] sm:$0xff]
    %v34 = vld [vmem:[#allocation2 + $0x30] sm:$0xff]
    %v35 = vld [vmem:[#allocation2 + $0x38] sm:$0xff]
    %v36 = vld [vmem:[#allocation2 + $0x40] sm:$0xff]
    %v37 = vld [vmem:[#allocation2 + $0x48] sm:$0xff]
    %v38 = vld [vmem:[#allocation2 + $0x50] sm:$0xff]
    %v39 = vld [vmem:[#allocation2 + $0x58] sm:$0xff]
    %v40 = vld [vmem:[#allocation2 + $0x60] sm:$0xff]
    %v41 = vld [vmem:[#allocation2 + $0x68] sm:$0xff]
    %v42 = vld [vmem:[#allocation2 + $0x70] sm:$0xff]
    %v43 = vld [vmem:[#allocation2 + $0x78] sm:$0xff]
    %v44 = vld [vmem:[#allocation2 + $0x80] sm:$0xff]
    %v45 = vld [vmem:[#allocation2 + $0x88] sm:$0xff]
    %v46 = vld [vmem:[#allocation2 + $0x90] sm:$0xff]
    %v47 = vld [vmem:[#allocation2 + $0x98] sm:$0xff]
    %v48 = vld [vmem:[#allocation2 + $0xa0] sm:$0xff]
    %v49 = vld [vmem:[#allocation2 + $0xa8] sm:$0xff]
    %v50 = vld [vmem:[#allocation2 + $0xb0] sm:$0xff]
    %v51 = vld [vmem:[#allocation2 + $0xb8] sm:$0xff]
    %v52 = vld [vmem:[#allocation2 + $0xc0] sm:$0xff]
    %v53 = vld [vmem:[#allocation2 + $0xc8] sm:$0xff]
    %v54 = vld [vmem:[#allocation2 + $0xd0] sm:$0xff]
    %v55 = vld [vmem:[#allocation2 + $0xd8] sm:$0xff]
    %v56 = vld [vmem:[#allocation2 + $0xe0] sm:$0xff]
    %v57 = vld [vmem:[#allocation2 + $0xe8] sm:$0xff]
    %v58 = vld [vmem:[#allocation2 + $0xf0] sm:$0xff]
    %v59 = vld [vmem:[#allocation2 + $0xf8] sm:$0xff]
    %v60 = vmul.f32 %v28, %v28
    %v61 = vmul.f32 %v29, %v29
    %v62 = vmul.f32 %v30, %v30
    %v63 = vmul.f32 %v31, %v31
    %v64 = vmul.f32 %v32, %v32
    %v65 = vmul.f32 %v33, %v33
    %v66 = vmul.f32 %v34, %v34
    %v67 = vmul.f32 %v35, %v35
    %v68 = vmul.f32 %v36, %v36
    %v69 = vmul.f32 %v37, %v37
    %v70 = vmul.f32 %v38, %v38
    %v71 = vmul.f32 %v39, %v39
    %v72 = vmul.f32 %v40, %v40
    %v73 = vmul.f32 %v41, %v41
    %v74 = vmul.f32 %v42, %v42
    %v75 = vmul.f32 %v43, %v43
    %v76 = vmul.f32 %v44, %v44
    %v77 = vmul.f32 %v45, %v45
    %v78 = vmul.f32 %v46, %v46
    %v79 = vmul.f32 %v47, %v47
    %v80 = vmul.f32 %v48, %v48
    %v81 = vmul.f32 %v49, %v49
    %v82 = vmul.f32 %v50, %v50
    %v83 = vmul.f32 %v51, %v51
    %v84 = vmul.f32 %v52, %v52
    %v85 = vmul.f32 %v53, %v53
    %v86 = vmul.f32 %v54, %v54
    %v87 = vmul.f32 %v55, %v55
    %v88 = vmul.f32 %v56, %v56
    %v89 = vmul.f32 %v57, %v57
    %v90 = vmul.f32 %v58, %v58
    %v91 = vmul.f32 %v59, %v59
    %92 = vadd.xlane.f32.xlu0 %v60
    %v93 = vpop.xlane.xlu0 %92
    %94 = vadd.xlane.f32.xlu0 %v61
    %v95 = vpop.xlane.xlu0 %94
    %96 = vadd.xlane.f32.xlu0 %v62
    %v97 = vpop.xlane.xlu0 %96
    %98 = vadd.xlane.f32.xlu0 %v63
    %v99 = vpop.xlane.xlu0 %98
    %100 = vadd.xlane.f32.xlu0 %v64
    %v101 = vpop.xlane.xlu0 %100
    %102 = vadd.xlane.f32.xlu0 %v65
    %v103 = vpop.xlane.xlu0 %102
    %104 = vadd.xlane.f32.xlu0 %v66
    %v105 = vpop.xlane.xlu0 %104
    %106 = vadd.xlane.f32.xlu0 %v67
    %v107 = vpop.xlane.xlu0 %106
    %108 = vadd.xlane.f32.xlu0 %v68
    %v109 = vpop.xlane.xlu0 %108
    %110 = vadd.xlane.f32.xlu0 %v69
    %v111 = vpop.xlane.xlu0 %110
    %112 = vadd.xlane.f32.xlu0 %v70
    %v113 = vpop.xlane.xlu0 %112
    %114 = vadd.xlane.f32.xlu0 %v71
    %v115 = vpop.xlane.xlu0 %114
    %116 = vadd.xlane.f32.xlu0 %v72
    %v117 = vpop.xlane.xlu0 %116
    %118 = vadd.xlane.f32.xlu0 %v73
    %v119 = vpop.xlane.xlu0 %118
    %120 = vadd.xlane.f32.xlu0 %v74
    %v121 = vpop.xlane.xlu0 %120
    %122 = vadd.xlane.f32.xlu0 %v75
    %v123 = vpop.xlane.xlu0 %122
    %124 = vadd.xlane.f32.xlu0 %v76
    %v125 = vpop.xlane.xlu0 %124
    %126 = vadd.xlane.f32.xlu0 %v77
    %v127 = vpop.xlane.xlu0 %126
    %128 = vadd.xlane.f32.xlu0 %v78
    %v129 = vpop.xlane.xlu0 %128
    %130 = vadd.xlane.f32.xlu0 %v79
    %v131 = vpop.xlane.xlu0 %130
    %132 = vadd.xlane.f32.xlu0 %v80
    %v133 = vpop.xlane.xlu0 %132
    %134 = vadd.xlane.f32.xlu0 %v81
    %v135 = vpop.xlane.xlu0 %134
    %136 = vadd.xlane.f32.xlu0 %v82
    %v137 = vpop.xlane.xlu0 %136
    %138 = vadd.xlane.f32.xlu0 %v83
    %v139 = vpop.xlane.xlu0 %138
    %140 = vadd.xlane.f32.xlu0 %v84
    %v141 = vpop.xlane.xlu0 %140
    %142 = vadd.xlane.f32.xlu0 %v85
    %v143 = vpop.xlane.xlu0 %142
    %144 = vadd.xlane.f32.xlu0 %v86
    %v145 = vpop.xlane.xlu0 %144
    %146 = vadd.xlane.f32.xlu0 %v87
    %v147 = vpop.xlane.xlu0 %146
    %148 = vadd.xlane.f32.xlu0 %v88
    %v149 = vpop.xlane.xlu0 %148
    %150 = vadd.xlane.f32.xlu0 %v89
    %v151 = vpop.xlane.xlu0 %150
    %152 = vadd.xlane.f32.xlu0 %v90
    %v153 = vpop.xlane.xlu0 %152
    %154 = vadd.xlane.f32.xlu0 %v91
    %v155 = vpop.xlane.xlu0 %154
    %v156 = vmax.f32 %v93, 1e-24
    %v157 = vmax.f32 %v95, 1e-24
    %v158 = vmax.f32 %v97, 1e-24
    %v159 = vmax.f32 %v99, 1e-24
    %v160 = vmax.f32 %v101, 1e-24
    %v161 = vmax.f32 %v103, 1e-24
    %v162 = vmax.f32 %v105, 1e-24
    %v163 = vmax.f32 %v107, 1e-24
    %v164 = vmax.f32 %v109, 1e-24
    %v165 = vmax.f32 %v111, 1e-24
    %v166 = vmax.f32 %v113, 1e-24
    %v167 = vmax.f32 %v115, 1e-24
    %v168 = vmax.f32 %v117, 1e-24
    %v169 = vmax.f32 %v119, 1e-24
    %v170 = vmax.f32 %v121, 1e-24
    %v171 = vmax.f32 %v123, 1e-24
    %v172 = vmax.f32 %v125, 1e-24
    %v173 = vmax.f32 %v127, 1e-24
    %v174 = vmax.f32 %v129, 1e-24
    %v175 = vmax.f32 %v131, 1e-24
    %v176 = vmax.f32 %v133, 1e-24
    %v177 = vmax.f32 %v135, 1e-24
    %v178 = vmax.f32 %v137, 1e-24
    %v179 = vmax.f32 %v139, 1e-24
    %v180 = vmax.f32 %v141, 1e-24
    %v181 = vmax.f32 %v143, 1e-24
    %v182 = vmax.f32 %v145, 1e-24
    %v183 = vmax.f32 %v147, 1e-24
    %v184 = vmax.f32 %v149, 1e-24
    %v185 = vmax.f32 %v151, 1e-24
    %v186 = vmax.f32 %v153, 1e-24
    %v187 = vmax.f32 %v155, 1e-24
    %v188 = vrsqrt.pop %v156
    %v189 = vmul.f32 %v188, %v156
    %v190 = vmul.f32 %v189, %v188
    %v191 = vmul.f32 0.5, %v190
    %v192 = vsub.f32 1.5, %v191
    %v193 = vmul.f32 %v188, %v192
    %vm194 = vweird.f32 %v156
    %vm195 = vweird.f32 %v188
    %vm196 = vmor %vm194, %vm195
    %v197 = vsel %vm196, %v188, %v193
    %v198 = vrsqrt.pop %v157
    %v199 = vmul.f32 %v198, %v157
    %v200 = vmul.f32 %v199, %v198
    %v201 = vmul.f32 0.5, %v200
    %v202 = vsub.f32 1.5, %v201
    %v203 = vmul.f32 %v198, %v202
    %vm204 = vweird.f32 %v157
    %vm205 = vweird.f32 %v198
    %vm206 = vmor %vm204, %vm205
    %v207 = vsel %vm206, %v198, %v203
    %v208 = vrsqrt.pop %v158
    %v209 = vmul.f32 %v208, %v158
    %v210 = vmul.f32 %v209, %v208
    %v211 = vmul.f32 0.5, %v210
    %v212 = vsub.f32 1.5, %v211
    %v213 = vmul.f32 %v208, %v212
    %vm214 = vweird.f32 %v158
    %vm215 = vweird.f32 %v208
    %vm216 = vmor %vm214, %vm215
    %v217 = vsel %vm216, %v208, %v213
    %v218 = vrsqrt.pop %v159
    %v219 = vmul.f32 %v218, %v159
    %v220 = vmul.f32 %v219, %v218
    %v221 = vmul.f32 0.5, %v220
    %v222 = vsub.f32 1.5, %v221
    %v223 = vmul.f32 %v218, %v222
    %vm224 = vweird.f32 %v159
    %vm225 = vweird.f32 %v218
    %vm226 = vmor %vm224, %vm225
    %v227 = vsel %vm226, %v218, %v223
    %v228 = vrsqrt.pop %v160
    %v229 = vmul.f32 %v228, %v160
    %v230 = vmul.f32 %v229, %v228
    %v231 = vmul.f32 0.5, %v230
    %v232 = vsub.f32 1.5, %v231
    %v233 = vmul.f32 %v228, %v232
    %vm234 = vweird.f32 %v160
    %vm235 = vweird.f32 %v228
    %vm236 = vmor %vm234, %vm235
    %v237 = vsel %vm236, %v228, %v233
    %v238 = vrsqrt.pop %v161
    %v239 = vmul.f32 %v238, %v161
    %v240 = vmul.f32 %v239, %v238
    %v241 = vmul.f32 0.5, %v240
    %v242 = vsub.f32 1.5, %v241
    %v243 = vmul.f32 %v238, %v242
    %vm244 = vweird.f32 %v161
    %vm245 = vweird.f32 %v238
    %vm246 = vmor %vm244, %vm245
    %v247 = vsel %vm246, %v238, %v243
    %v248 = vrsqrt.pop %v162
    %v249 = vmul.f32 %v248, %v162
    %v250 = vmul.f32 %v249, %v248
    %v251 = vmul.f32 0.5, %v250
    %v252 = vsub.f32 1.5, %v251
    %v253 = vmul.f32 %v248, %v252
    %vm254 = vweird.f32 %v162
    %vm255 = vweird.f32 %v248
    %vm256 = vmor %vm254, %vm255
    %v257 = vsel %vm256, %v248, %v253
    %v258 = vrsqrt.pop %v163
    %v259 = vmul.f32 %v258, %v163
    %v260 = vmul.f32 %v259, %v258
    %v261 = vmul.f32 0.5, %v260
    %v262 = vsub.f32 1.5, %v261
    %v263 = vmul.f32 %v258, %v262
    %vm264 = vweird.f32 %v163
    %vm265 = vweird.f32 %v258
    %vm266 = vmor %vm264, %vm265
    %v267 = vsel %vm266, %v258, %v263
    %v268 = vrsqrt.pop %v164
    %v269 = vmul.f32 %v268, %v164
    %v270 = vmul.f32 %v269, %v268
    %v271 = vmul.f32 0.5, %v270
    %v272 = vsub.f32 1.5, %v271
    %v273 = vmul.f32 %v268, %v272
    %vm274 = vweird.f32 %v164
    %vm275 = vweird.f32 %v268
    %vm276 = vmor %vm274, %vm275
    %v277 = vsel %vm276, %v268, %v273
    %v278 = vrsqrt.pop %v165
    %v279 = vmul.f32 %v278, %v165
    %v280 = vmul.f32 %v279, %v278
    %v281 = vmul.f32 0.5, %v280
    %v282 = vsub.f32 1.5, %v281
    %v283 = vmul.f32 %v278, %v282
    %vm284 = vweird.f32 %v165
    %vm285 = vweird.f32 %v278
    %vm286 = vmor %vm284, %vm285
    %v287 = vsel %vm286, %v278, %v283
    %v288 = vrsqrt.pop %v166
    %v289 = vmul.f32 %v288, %v166
    %v290 = vmul.f32 %v289, %v288
    %v291 = vmul.f32 0.5, %v290
    %v292 = vsub.f32 1.5, %v291
    %v293 = vmul.f32 %v288, %v292
    %vm294 = vweird.f32 %v166
    %vm295 = vweird.f32 %v288
    %vm296 = vmor %vm294, %vm295
    %v297 = vsel %vm296, %v288, %v293
    %v298 = vrsqrt.pop %v167
    %v299 = vmul.f32 %v298, %v167
    %v300 = vmul.f32 %v299, %v298
    %v301 = vmul.f32 0.5, %v300
    %v302 = vsub.f32 1.5, %v301
    %v303 = vmul.f32 %v298, %v302
    %vm304 = vweird.f32 %v167
    %vm305 = vweird.f32 %v298
    %vm306 = vmor %vm304, %vm305
    %v307 = vsel %vm306, %v298, %v303
    %v308 = vrsqrt.pop %v168
    %v309 = vmul.f32 %v308, %v168
    %v310 = vmul.f32 %v309, %v308
    %v311 = vmul.f32 0.5, %v310
    %v312 = vsub.f32 1.5, %v311
    %v313 = vmul.f32 %v308, %v312
    %vm314 = vweird.f32 %v168
    %vm315 = vweird.f32 %v308
    %vm316 = vmor %vm314, %vm315
    %v317 = vsel %vm316, %v308, %v313
    %v318 = vrsqrt.pop %v169
    %v319 = vmul.f32 %v318, %v169
    %v320 = vmul.f32 %v319, %v318
    %v321 = vmul.f32 0.5, %v320
    %v322 = vsub.f32 1.5, %v321
    %v323 = vmul.f32 %v318, %v322
    %vm324 = vweird.f32 %v169
    %vm325 = vweird.f32 %v318
    %vm326 = vmor %vm324, %vm325
    %v327 = vsel %vm326, %v318, %v323
    %v328 = vrsqrt.pop %v170
    %v329 = vmul.f32 %v328, %v170
    %v330 = vmul.f32 %v329, %v328
    %v331 = vmul.f32 0.5, %v330
    %v332 = vsub.f32 1.5, %v331
    %v333 = vmul.f32 %v328, %v332
    %vm334 = vweird.f32 %v170
    %vm335 = vweird.f32 %v328
    %vm336 = vmor %vm334, %vm335
    %v337 = vsel %vm336, %v328, %v333
    %v338 = vrsqrt.pop %v171
    %v339 = vmul.f32 %v338, %v171
    %v340 = vmul.f32 %v339, %v338
    %v341 = vmul.f32 0.5, %v340
    %v342 = vsub.f32 1.5, %v341
    %v343 = vmul.f32 %v338, %v342
    %vm344 = vweird.f32 %v171
    %vm345 = vweird.f32 %v338
    %vm346 = vmor %vm344, %vm345
    %v347 = vsel %vm346, %v338, %v343
    %v348 = vrsqrt.pop %v172
    %v349 = vmul.f32 %v348, %v172
    %v350 = vmul.f32 %v349, %v348
    %v351 = vmul.f32 0.5, %v350
    %v352 = vsub.f32 1.5, %v351
    %v353 = vmul.f32 %v348, %v352
    %vm354 = vweird.f32 %v172
    %vm355 = vweird.f32 %v348
    %vm356 = vmor %vm354, %vm355
    %v357 = vsel %vm356, %v348, %v353
    %v358 = vrsqrt.pop %v173
    %v359 = vmul.f32 %v358, %v173
    %v360 = vmul.f32 %v359, %v358
    %v361 = vmul.f32 0.5, %v360
    %v362 = vsub.f32 1.5, %v361
    %v363 = vmul.f32 %v358, %v362
    %vm364 = vweird.f32 %v173
    %vm365 = vweird.f32 %v358
    %vm366 = vmor %vm364, %vm365
    %v367 = vsel %vm366, %v358, %v363
    %v368 = vrsqrt.pop %v174
    %v369 = vmul.f32 %v368, %v174
    %v370 = vmul.f32 %v369, %v368
    %v371 = vmul.f32 0.5, %v370
    %v372 = vsub.f32 1.5, %v371
    %v373 = vmul.f32 %v368, %v372
    %vm374 = vweird.f32 %v174
    %vm375 = vweird.f32 %v368
    %vm376 = vmor %vm374, %vm375
    %v377 = vsel %vm376, %v368, %v373
    %v378 = vrsqrt.pop %v175
    %v379 = vmul.f32 %v378, %v175
    %v380 = vmul.f32 %v379, %v378
    %v381 = vmul.f32 0.5, %v380
    %v382 = vsub.f32 1.5, %v381
    %v383 = vmul.f32 %v378, %v382
    %vm384 = vweird.f32 %v175
    %vm385 = vweird.f32 %v378
    %vm386 = vmor %vm384, %vm385
    %v387 = vsel %vm386, %v378, %v383
    %v388 = vrsqrt.pop %v176
    %v389 = vmul.f32 %v388, %v176
    %v390 = vmul.f32 %v389, %v388
    %v391 = vmul.f32 0.5, %v390
    %v392 = vsub.f32 1.5, %v391
    %v393 = vmul.f32 %v388, %v392
    %vm394 = vweird.f32 %v176
    %vm395 = vweird.f32 %v388
    %vm396 = vmor %vm394, %vm395
    %v397 = vsel %vm396, %v388, %v393
    %v398 = vrsqrt.pop %v177
    %v399 = vmul.f32 %v398, %v177
    %v400 = vmul.f32 %v399, %v398
    %v401 = vmul.f32 0.5, %v400
    %v402 = vsub.f32 1.5, %v401
    %v403 = vmul.f32 %v398, %v402
    %vm404 = vweird.f32 %v177
    %vm405 = vweird.f32 %v398
    %vm406 = vmor %vm404, %vm405
    %v407 = vsel %vm406, %v398, %v403
    %v408 = vrsqrt.pop %v178
    %v409 = vmul.f32 %v408, %v178
    %v410 = vmul.f32 %v409, %v408
    %v411 = vmul.f32 0.5, %v410
    %v412 = vsub.f32 1.5, %v411
    %v413 = vmul.f32 %v408, %v412
    %vm414 = vweird.f32 %v178
    %vm415 = vweird.f32 %v408
    %vm416 = vmor %vm414, %vm415
    %v417 = vsel %vm416, %v408, %v413
    %v418 = vrsqrt.pop %v179
    %v419 = vmul.f32 %v418, %v179
    %v420 = vmul.f32 %v419, %v418
    %v421 = vmul.f32 0.5, %v420
    %v422 = vsub.f32 1.5, %v421
    %v423 = vmul.f32 %v418, %v422
    %vm424 = vweird.f32 %v179
    %vm425 = vweird.f32 %v418
    %vm426 = vmor %vm424, %vm425
    %v427 = vsel %vm426, %v418, %v423
    %v428 = vrsqrt.pop %v180
    %v429 = vmul.f32 %v428, %v180
    %v430 = vmul.f32 %v429, %v428
    %v431 = vmul.f32 0.5, %v430
    %v432 = vsub.f32 1.5, %v431
    %v433 = vmul.f32 %v428, %v432
    %vm434 = vweird.f32 %v180
    %vm435 = vweird.f32 %v428
    %vm436 = vmor %vm434, %vm435
    %v437 = vsel %vm436, %v428, %v433
    %v438 = vrsqrt.pop %v181
    %v439 = vmul.f32 %v438, %v181
    %v440 = vmul.f32 %v439, %v438
    %v441 = vmul.f32 0.5, %v440
    %v442 = vsub.f32 1.5, %v441
    %v443 = vmul.f32 %v438, %v442
    %vm444 = vweird.f32 %v181
    %vm445 = vweird.f32 %v438
    %vm446 = vmor %vm444, %vm445
    %v447 = vsel %vm446, %v438, %v443
    %v448 = vrsqrt.pop %v182
    %v449 = vmul.f32 %v448, %v182
    %v450 = vmul.f32 %v449, %v448
    %v451 = vmul.f32 0.5, %v450
    %v452 = vsub.f32 1.5, %v451
    %v453 = vmul.f32 %v448, %v452
    %vm454 = vweird.f32 %v182
    %vm455 = vweird.f32 %v448
    %vm456 = vmor %vm454, %vm455
    %v457 = vsel %vm456, %v448, %v453
    %v458 = vrsqrt.pop %v183
    %v459 = vmul.f32 %v458, %v183
    %v460 = vmul.f32 %v459, %v458
    %v461 = vmul.f32 0.5, %v460
    %v462 = vsub.f32 1.5, %v461
    %v463 = vmul.f32 %v458, %v462
    %vm464 = vweird.f32 %v183
    %vm465 = vweird.f32 %v458
    %vm466 = vmor %vm464, %vm465
    %v467 = vsel %vm466, %v458, %v463
    %v468 = vrsqrt.pop %v184
    %v469 = vmul.f32 %v468, %v184
    %v470 = vmul.f32 %v469, %v468
    %v471 = vmul.f32 0.5, %v470
    %v472 = vsub.f32 1.5, %v471
    %v473 = vmul.f32 %v468, %v472
    %vm474 = vweird.f32 %v184
    %vm475 = vweird.f32 %v468
    %vm476 = vmor %vm474, %vm475
    %v477 = vsel %vm476, %v468, %v473
    %v478 = vrsqrt.pop %v185
    %v479 = vmul.f32 %v478, %v185
    %v480 = vmul.f32 %v479, %v478
    %v481 = vmul.f32 0.5, %v480
    %v482 = vsub.f32 1.5, %v481
    %v483 = vmul.f32 %v478, %v482
    %vm484 = vweird.f32 %v185
    %vm485 = vweird.f32 %v478
    %vm486 = vmor %vm484, %vm485
    %v487 = vsel %vm486, %v478, %v483
    %v488 = vrsqrt.pop %v186
    %v489 = vmul.f32 %v488, %v186
    %v490 = vmul.f32 %v489, %v488
    %v491 = vmul.f32 0.5, %v490
    %v492 = vsub.f32 1.5, %v491
    %v493 = vmul.f32 %v488, %v492
    %vm494 = vweird.f32 %v186
    %vm495 = vweird.f32 %v488
    %vm496 = vmor %vm494, %vm495
    %v497 = vsel %vm496, %v488, %v493
    %v498 = vrsqrt.pop %v187
    %v499 = vmul.f32 %v498, %v187
    %v500 = vmul.f32 %v499, %v498
    %v501 = vmul.f32 0.5, %v500
    %v502 = vsub.f32 1.5, %v501
    %v503 = vmul.f32 %v498, %v502
    %vm504 = vweird.f32 %v187
    %vm505 = vweird.f32 %v498
    %vm506 = vmor %vm504, %vm505
    %v507 = vsel %vm506, %v498, %v503
    %v508 = vmul.f32 %v28, %v197
    %v509 = vmul.f32 %v29, %v207
    %v510 = vmul.f32 %v30, %v217
    %v511 = vmul.f32 %v31, %v227
    %v512 = vmul.f32 %v32, %v237
    %v513 = vmul.f32 %v33, %v247
    %v514 = vmul.f32 %v34, %v257
    %v515 = vmul.f32 %v35, %v267
    %v516 = vmul.f32 %v36, %v277
    %v517 = vmul.f32 %v37, %v287
    %v518 = vmul.f32 %v38, %v297
    %v519 = vmul.f32 %v39, %v307
    %v520 = vmul.f32 %v40, %v317
    %v521 = vmul.f32 %v41, %v327
    %v522 = vmul.f32 %v42, %v337
    %v523 = vmul.f32 %v43, %v347
    %v524 = vmul.f32 %v44, %v357
    %v525 = vmul.f32 %v45, %v367
    %v526 = vmul.f32 %v46, %v377
    %v527 = vmul.f32 %v47, %v387
    %v528 = vmul.f32 %v48, %v397
    %v529 = vmul.f32 %v49, %v407
    %v530 = vmul.f32 %v50, %v417
    %v531 = vmul.f32 %v51, %v427
    %v532 = vmul.f32 %v52, %v437
    %v533 = vmul.f32 %v53, %v447
    %v534 = vmul.f32 %v54, %v457
    %v535 = vmul.f32 %v55, %v467
    %v536 = vmul.f32 %v56, %v477
    %v537 = vmul.f32 %v57, %v487
    %v538 = vmul.f32 %v58, %v497
    %v539 = vmul.f32 %v59, %v507
    %540 = vst [vmem:[#allocation5] sm:$0xff] %v508
    %541 = vst [vmem:[#allocation5 + $0x8] sm:$0xff] %v509
    %542 = vst [vmem:[#allocation5 + $0x10] sm:$0xff] %v510
    %543 = vst [vmem:[#allocation5 + $0x18] sm:$0xff] %v511
    %544 = vst [vmem:[#allocation5 + $0x20] sm:$0xff] %v512
    %545 = vst [vmem:[#allocation5 + $0x28] sm:$0xff] %v513
    %546 = vst [vmem:[#allocation5 + $0x30] sm:$0xff] %v514
    %547 = vst [vmem:[#allocation5 + $0x38] sm:$0xff] %v515
    %548 = vst [vmem:[#allocation5 + $0x40] sm:$0xff] %v516
    %549 = vst [vmem:[#allocation5 + $0x48] sm:$0xff] %v517
    %550 = vst [vmem:[#allocation5 + $0x50] sm:$0xff] %v518
    %551 = vst [vmem:[#allocation5 + $0x58] sm:$0xff] %v519
    %552 = vst [vmem:[#allocation5 + $0x60] sm:$0xff] %v520
    %553 = vst [vmem:[#allocation5 + $0x68] sm:$0xff] %v521
    %554 = vst [vmem:[#allocation5 + $0x70] sm:$0xff] %v522
    %555 = vst [vmem:[#allocation5 + $0x78] sm:$0xff] %v523
    %556 = vst [vmem:[#allocation5 + $0x80] sm:$0xff] %v524
    %557 = vst [vmem:[#allocation5 + $0x88] sm:$0xff] %v525
    %558 = vst [vmem:[#allocation5 + $0x90] sm:$0xff] %v526
    %559 = vst [vmem:[#allocation5 + $0x98] sm:$0xff] %v527
    %560 = vst [vmem:[#allocation5 + $0xa0] sm:$0xff] %v528
    %561 = vst [vmem:[#allocation5 + $0xa8] sm:$0xff] %v529
    %562 = vst [vmem:[#allocation5 + $0xb0] sm:$0xff] %v530
    %563 = vst [vmem:[#allocation5 + $0xb8] sm:$0xff] %v531
    %564 = vst [vmem:[#allocation5 + $0xc0] sm:$0xff] %v532
    %565 = vst [vmem:[#allocation5 + $0xc8] sm:$0xff] %v533
    %566 = vst [vmem:[#allocation5 + $0xd0] sm:$0xff] %v534
    %567 = vst [vmem:[#allocation5 + $0xd8] sm:$0xff] %v535
    %568 = vst [vmem:[#allocation5 + $0xe0] sm:$0xff] %v536
    %569 = vst [vmem:[#allocation5 + $0xe8] sm:$0xff] %v537
    %570 = vst [vmem:[#allocation5 + $0xf0] sm:$0xff] %v538
    %571 = vst [vmem:[#allocation5 + $0xf8] sm:$0xff] %v539
    %572 = vxpose.xlu0.b32.start [1/16] %v508, 128
    %573 = vxpose.xlu0.b32.cont [2/16] %v509, 128
    %574 = vxpose.xlu0.b32.cont [3/16] %v510, 128
    %575 = vxpose.xlu0.b32.cont [4/16] %v511, 128
    %576 = vxpose.xlu0.b32.cont [5/16] %v512, 128
    %577 = vxpose.xlu0.b32.cont [6/16] %v513, 128
    %578 = vxpose.xlu0.b32.cont [7/16] %v514, 128
    %579 = vxpose.xlu0.b32.cont [8/16] %v515, 128
    %580 = vxpose.xlu0.b32.cont [9/16] %v516, 128
    %581 = vxpose.xlu0.b32.cont [10/16] %v517, 128
    %582 = vxpose.xlu0.b32.cont [11/16] %v518, 128
    %583 = vxpose.xlu0.b32.cont [12/16] %v519, 128
    %584 = vxpose.xlu0.b32.cont [13/16] %v520, 128
    %585 = vxpose.xlu0.b32.cont [14/16] %v521, 128
    %586 = vxpose.xlu0.b32.cont [15/16] %v522, 128
    %587 = vxpose.xlu0.b32.end [16/16] %v523, 128
    %v588 = vpop.trf.xlu0
    %v589 = vpop.trf.xlu0
    %v590 = vpop.trf.xlu0
    %v591 = vpop.trf.xlu0
    %v592 = vpop.trf.xlu0
    %v593 = vpop.trf.xlu0
    %v594 = vpop.trf.xlu0
    %v595 = vpop.trf.xlu0
    %v596 = vpop.trf.xlu0
    %v597 = vpop.trf.xlu0
    %v598 = vpop.trf.xlu0
    %v599 = vpop.trf.xlu0
    %v600 = vpop.trf.xlu0
    %v601 = vpop.trf.xlu0
    %v602 = vpop.trf.xlu0
    %v603 = vpop.trf.xlu0
    %604 = vxpose.xlu0.b32.start [1/16] %v524, 128
    %605 = vxpose.xlu0.b32.cont [2/16] %v525, 128
    %606 = vxpose.xlu0.b32.cont [3/16] %v526, 128
    %607 = vxpose.xlu0.b32.cont [4/16] %v527, 128
    %608 = vxpose.xlu0.b32.cont [5/16] %v528, 128
    %609 = vxpose.xlu0.b32.cont [6/16] %v529, 128
    %610 = vxpose.xlu0.b32.cont [7/16] %v530, 128
    %611 = vxpose.xlu0.b32.cont [8/16] %v531, 128
    %612 = vxpose.xlu0.b32.cont [9/16] %v532, 128
    %613 = vxpose.xlu0.b32.cont [10/16] %v533, 128
    %614 = vxpose.xlu0.b32.cont [11/16] %v534, 128
    %615 = vxpose.xlu0.b32.cont [12/16] %v535, 128
    %616 = vxpose.xlu0.b32.cont [13/16] %v536, 128
    %617 = vxpose.xlu0.b32.cont [14/16] %v537, 128
    %618 = vxpose.xlu0.b32.cont [15/16] %v538, 128
    %619 = vxpose.xlu0.b32.end [16/16] %v539, 128
    %v620 = vpop.trf.xlu0
    %v621 = vpop.trf.xlu0
    %v622 = vpop.trf.xlu0
    %v623 = vpop.trf.xlu0
    %v624 = vpop.trf.xlu0
    %v625 = vpop.trf.xlu0
    %v626 = vpop.trf.xlu0
    %v627 = vpop.trf.xlu0
    %v628 = vpop.trf.xlu0
    %v629 = vpop.trf.xlu0
    %v630 = vpop.trf.xlu0
    %v631 = vpop.trf.xlu0
    %v632 = vpop.trf.xlu0
    %v633 = vpop.trf.xlu0
    %v634 = vpop.trf.xlu0
    %v635 = vpop.trf.xlu0
    %v636 = vpack.c.bf16 %v620, %v588
    %v637 = vpack.c.bf16 %v621, %v589
    %v638 = vpack.c.bf16 %v622, %v590
    %v639 = vpack.c.bf16 %v623, %v591
    %v640 = vpack.c.bf16 %v624, %v592
    %v641 = vpack.c.bf16 %v625, %v593
    %v642 = vpack.c.bf16 %v626, %v594
    %v643 = vpack.c.bf16 %v627, %v595
    %v644 = vpack.c.bf16 %v628, %v596
    %v645 = vpack.c.bf16 %v629, %v597
    %v646 = vpack.c.bf16 %v630, %v598
    %v647 = vpack.c.bf16 %v631, %v599
    %v648 = vpack.c.bf16 %v632, %v600
    %v649 = vpack.c.bf16 %v633, %v601
    %v650 = vpack.c.bf16 %v634, %v602
    %v651 = vpack.c.bf16 %v635, %v603
    %652 = vst [vmem:[#allocation6] sm:$0xff] %v636
    %653 = vst [vmem:[#allocation6 + $0x8] sm:$0xff] %v637
    %654 = vst [vmem:[#allocation6 + $0x10] sm:$0xff] %v638
    %655 = vst [vmem:[#allocation6 + $0x18] sm:$0xff] %v639
    %656 = vst [vmem:[#allocation6 + $0x20] sm:$0xff] %v640
    %657 = vst [vmem:[#allocation6 + $0x28] sm:$0xff] %v641
    %658 = vst [vmem:[#allocation6 + $0x30] sm:$0xff] %v642
    %659 = vst [vmem:[#allocation6 + $0x38] sm:$0xff] %v643
    %660 = vst [vmem:[#allocation6 + $0x40] sm:$0xff] %v644
    %661 = vst [vmem:[#allocation6 + $0x48] sm:$0xff] %v645
    %662 = vst [vmem:[#allocation6 + $0x50] sm:$0xff] %v646
    %663 = vst [vmem:[#allocation6 + $0x58] sm:$0xff] %v647
    %664 = vst [vmem:[#allocation6 + $0x60] sm:$0xff] %v648
    %665 = vst [vmem:[#allocation6 + $0x68] sm:$0xff] %v649
    %666 = vst [vmem:[#allocation6 + $0x70] sm:$0xff] %v650
    %667 = vst [vmem:[#allocation6 + $0x78] sm:$0xff] %v651
    // Predicated region
    $region10: #{tpu_custom_call.1} parent=1 // pred_check
      _
    $region11: #{tpu_custom_call.1} parent=1 // pred_check_branch
      %669 = sbr.rel (0) target = $region13
    $region12: #{tpu_custom_call.1} parent=1 // pred_region
      %671 = vsyncadd [#allocation4], 0
      %s672 = sshll.u32 [#allocation5], 4
      %s673 = int_to_ptr.vmem [resolvable:$true] %s672
      %s674 = sshll.u32 %s1, 4
      %s675 = int_to_ptr.hbm [resolvable:$true] %s674
      %680 = dma.vmem_to_hbm [thread:$0]  %s673, 4096, %s675, [#allocation4], 128, 128, 8
    $region13: #{tpu_custom_call.1} parent=1 // pred_fallthru
      _
    // Predicated region
    $region14: #{tpu_custom_call.1} parent=1 // pred_check
      _
    $region15: #{tpu_custom_call.1} parent=1 // pred_check_branch
      %682 = sbr.rel (0) target = $region17
    $region16: #{tpu_custom_call.1} parent=1 // pred_region
      %684 = vsyncadd [#allocation7], 0
      %s685 = sshll.u32 [#allocation6], 4
      %s686 = int_to_ptr.vmem [resolvable:$true] %s685
      %s687 = sshll.u32 %s2, 4
      %s688 = int_to_ptr.hbm [resolvable:$true] %s687
      %693 = dma.vmem_to_hbm [thread:$0]  %s686, 2048, %s688, [#allocation7], 128, 128, 8
    $region17: #{tpu_custom_call.1} parent=1 // pred_fallthru
      _
    // Predicated region
    $region18: #{tpu_custom_call.1} parent=1 // pred_check
      _
    $region19: #{tpu_custom_call.1} parent=1 // pred_check_branch
      %695 = sbr.rel (0) target = $region21
    $region20: #{tpu_custom_call.1} parent=1 // pred_region
      %697 = dma.done [#allocation4], 4096
    $region21: #{tpu_custom_call.1} parent=1 // pred_fallthru
      _
    // Predicated region
    $region22: #{tpu_custom_call.1} parent=1 // pred_check
      _
    $region23: #{tpu_custom_call.1} parent=1 // pred_check_branch
      %699 = sbr.rel (0) target = $region25
    $region24: #{tpu_custom_call.1} parent=1 // pred_region
      %701 = dma.done [#allocation7], 2048
    $region25: #{tpu_custom_call.1} parent=1 // pred_fallthru
      _
    %702 = vsyncpa [#allocation3], 1
    %703 = vsyncpa [#allocation4], 1
    %704 = vsyncpa [#allocation7], 1

</llo_original>
